<compile_context>
chip_gen: v7x
topology: tpu7x:2x2x1
jax: 0.10.0
libtpu: 0.0.40
codegen_flags: <defaults>
</compile_context>

<pallas_src>
import functools

import jax
import jax.numpy as jnp
from jax.experimental import pallas as pl
from jax.experimental.pallas import tpu as pltpu

_LANE = 128
_SUBLANE = 8


def _round_up(x, m):
    return ((x + m - 1) // m) * m


def _make_mlp_kernel(num_layers, activation_fn):
    """Build a fused MLP kernel body.

    Ref order: (x, w0, b0, w1, b1, ..., w_{L-1}, b_{L-1}, out)
    w_i is already transposed to [in, out]; b_i is [1, out].
    The last layer is already padded to a lane-dense (128-multiple) output width.
    """

    def kernel(*refs):
        x_ref = refs[0]
        out_ref = refs[-1]
        h = x_ref[...].astype(jnp.float32)
        for i in range(num_layers):
            w = refs[1 + 2 * i][...].astype(jnp.float32)
            b = refs[2 + 2 * i][...].astype(jnp.float32)
            h = jnp.dot(h, w, preferred_element_type=jnp.float32) + b
            if (i < num_layers - 1) and (activation_fn is not None):
                h = activation_fn(h)
        out_ref[...] = h.astype(out_ref.dtype)

    return kernel


class BuildNetworkLayers:
    """JAX/Pallas port of the PyTorch `build_network_layers` module."""

    def __init__(self, input_dim, output_dim, widths, activation, key, batch_tile=256):
        self.input_dim = int(input_dim)
        self.output_dim = int(output_dim)
        self.widths = list(widths)
        self.activation = activation
        self._batch_tile = int(batch_tile)

        # Layer sizes: [input_dim] + widths -> widths + [output_dim]
        in_dims = [self.input_dim] + self.widths
        out_dims = self.widths + [self.output_dim]

        # Deterministic parameter init (mimics nn.Linear default: U(-1/sqrt(fan_in), +1/sqrt(fan_in)))
        self.weights = []  # PyTorch convention: [out, in]  (returned to caller, like .weight.data)
        self.biases = []   # [out]
        for fi, fo in zip(in_dims, out_dims):
            kw, kb, key = jax.random.split(key, 3)
            bound = 1.0 / (fi ** 0.5)
            w = jax.random.uniform(kw, (fo, fi), jnp.float32, -bound, bound)
            b = jax.random.uniform(kb, (fo,), jnp.float32, -bound, bound)
            self.weights.append(w)
            self.biases.append(b)

        self.num_layers = len(self.weights)

        # Hoisted, kernel-ready parameters:
        #   * weights transposed to [in, out]
        #   * biases as [1, out]
        #   * last layer zero-padded to a 128-lane-dense output slab (extra lanes are
        #     exactly zero and get sliced off in the wrapper).
        self.out_pad = _round_up(max(self.output_dim, 1), _LANE)
        wts_t, bs2d = [], []
        for i, (w, b) in enumerate(zip(self.weights, self.biases)):
            wt = w.T                       # [in, out]
            b2 = b[None, :]                # [1, out]
            if i == self.num_layers - 1 and self.out_pad != self.output_dim:
                pad = self.out_pad - self.output_dim
                wt = jnp.pad(wt, ((0, 0), (0, pad)))
                b2 = jnp.pad(b2, ((0, 0), (0, pad)))
            wts_t.append(wt)
            bs2d.append(b2)
        self._wts_t = tuple(wts_t)
        self._bs2d = tuple(bs2d)

        self._kernel = _make_mlp_kernel(self.num_layers, activation)

    @functools.partial(jax.jit, static_argnums=0)
    def _run(self, x, wts_t, bs2d):
        batch = x.shape[0]

        # Batch tile: multiple of 8 sublanes, capped at self._batch_tile, clamped to batch.
        tm = min(self._batch_tile, _round_up(batch, _SUBLANE))
        tm = _round_up(tm, _SUBLANE)
        padded_b = _round_up(batch, tm)
        if padded_b != batch:
            x = jnp.pad(x, ((0, padded_b - batch), (0, 0)))
        grid = (padded_b // tm,)

        # Activations tiled along batch; weights/biases VMEM-resident (constant block index).
        args = [x]
        in_specs = [pl.BlockSpec((tm, self.input_dim), lambda i: (i, 0))]
        for w_t, b2 in zip(wts_t, bs2d):
            args.append(w_t)
            args.append(b2)
            in_specs.append(pl.BlockSpec(w_t.shape, lambda i: (0, 0)))
            in_specs.append(pl.BlockSpec(b2.shape, lambda i: (0, 0)))

        # Advisory cost estimate for XLA's scheduler.
        in_dims = [self.input_dim] + self.widths
        out_dims = self.widths + [self.out_pad]
        flops = 2 * padded_b * sum(fi * fo for fi, fo in zip(in_dims, out_dims))
        transcendentals = padded_b * sum(self.widths) if self.activation is not None else 0
        bytes_accessed = 4 * (
            padded_b * (self.input_dim + self.out_pad)
            + sum(int(w.size) + int(b.size) for w, b in zip(wts_t, bs2d))
        )

        out = pl.pallas_call(
            self._kernel,
            out_shape=jax.ShapeDtypeStruct((padded_b, self.out_pad), x.dtype),
            grid=grid,
            in_specs=in_specs,
            out_specs=pl.BlockSpec((tm, self.out_pad), lambda i: (i, 0)),
            compiler_params=pltpu.CompilerParams(
                dimension_semantics=("parallel",),
            ),
            cost_estimate=pl.CostEstimate(
                flops=flops,
                transcendentals=transcendentals,
                bytes_accessed=bytes_accessed,
            ),
        )(*args)

        # Slice padded batch rows and padded output lanes back off.
        return out[:batch, : self.output_dim]

    def __call__(self, x):
        out = self._run(x, self._wts_t, self._bs2d)
        # Match PyTorch return signature: (x, weights, biases) with weights in [out, in].
        return out, list(self.weights), list(self.biases)


def _reference_forward(x, weights, biases, activation):
    """Pure-JAX reference of the PyTorch forward pass."""
    h = x
    n = len(weights)
    for i, (w, b) in enumerate(zip(weights, biases)):
        h = h @ w.T + b
        if i < n - 1 and activation is not None:
            h = activation(h)
    return h


if __name__ == "__main__":
    key = jax.random.PRNGKey(0)
    k_in, k_in_big, k_params = jax.random.split(key, 3)

    # Small shapes consistent with the module: encoder-like MLP.
    batch = 8
    input_dim = 16
    widths = [32, 32]
    output_dim = 8
    activation = jax.nn.sigmoid  # SINDy autoencoder typically uses sigmoid

    net = BuildNetworkLayers(input_dim, output_dim, widths, activation, k_params)

    # --- small batch (single grid step) ---
    x = jax.random.normal(k_in, (batch, input_dim), jnp.float32)
    out, weights, biases = net(x)
    out = jax.block_until_ready(out)
    ref = _reference_forward(x, weights, biases, activation)
    assert out.shape == (batch, output_dim)
    assert jnp.allclose(out, ref, atol=1e-5, rtol=1e-5), "Pallas MLP mismatch vs reference"

    # --- larger batch (exercises the batch grid + padding path) ---
    big_batch = 520  # -> TM=256, padded to 768, grid=(3,)
    xb = jax.random.normal(k_in_big, (big_batch, input_dim), jnp.float32)
    outb, _, _ = net(xb)
    outb = jax.block_until_ready(outb)
    refb = _reference_forward(xb, weights, biases, activation)
    assert outb.shape == (big_batch, output_dim)
    assert jnp.allclose(outb, refb, atol=1e-5, rtol=1e-5), "Pallas gridded MLP mismatch"

    # --- empty-widths branch (single Linear, no activation) ---
    net0 = BuildNetworkLayers(input_dim, output_dim, [], activation, k_params)
    out0, w0, b0 = net0(x)
    out0 = jax.block_until_ready(out0)
    ref0 = _reference_forward(x, w0, b0, None)
    assert jnp.allclose(out0, ref0, atol=1e-5, rtol=1e-5), "Pallas single-layer mismatch"

    print("KERNEL_OK")
</pallas_src>

<mosaic_0001>
module attributes {stable_mosaic.version = 11 : i64} {
  func.func @kernel(%arg0: i32, %arg1: memref<8x16xf32, #tpu.memory_space<vmem>>, %arg2: memref<16x32xf32, #tpu.memory_space<vmem>>, %arg3: memref<1x32xf32, #tpu.memory_space<vmem>>, %arg4: memref<32x32xf32, #tpu.memory_space<vmem>>, %arg5: memref<1x32xf32, #tpu.memory_space<vmem>>, %arg6: memref<32x128xf32, #tpu.memory_space<vmem>>, %arg7: memref<1x128xf32, #tpu.memory_space<vmem>>, %arg8: memref<8x128xf32, #tpu.memory_space<vmem>>) attributes {dimension_semantics = [#tpu.dimension_semantics<parallel>], iteration_bounds = array<i64: 1>, scalar_prefetch = 0 : i64, scratch_operands = 0 : i64, tpu.core_type = #tpu.core_type<tc>, window_params = [{transform_indices = @transform_0, window_bounds = array<i64: 8, 16>}, {pipeline_mode = #tpu.pipeline_mode<synchronous>, transform_indices = @transform_1, window_bounds = array<i64: 16, 32>}, {pipeline_mode = #tpu.pipeline_mode<synchronous>, transform_indices = @transform_2, window_bounds = array<i64: 1, 32>}, {pipeline_mode = #tpu.pipeline_mode<synchronous>, transform_indices = @transform_3, window_bounds = array<i64: 32, 32>}, {pipeline_mode = #tpu.pipeline_mode<synchronous>, transform_indices = @transform_4, window_bounds = array<i64: 1, 32>}, {pipeline_mode = #tpu.pipeline_mode<synchronous>, transform_indices = @transform_5, window_bounds = array<i64: 32, 128>}, {pipeline_mode = #tpu.pipeline_mode<synchronous>, transform_indices = @transform_6, window_bounds = array<i64: 1, 128>}, {transform_indices = @transform_7, window_bounds = array<i64: 8, 128>}]} {
    %c0 = arith.constant 0 : index
    %c0_0 = arith.constant 0 : index
    %0 = vector.load %arg1[%c0, %c0_0] : memref<8x16xf32, #tpu.memory_space<vmem>>, vector<8x16xf32>
    %c0_1 = arith.constant 0 : index
    %c0_2 = arith.constant 0 : index
    %1 = vector.load %arg2[%c0_1, %c0_2] : memref<16x32xf32, #tpu.memory_space<vmem>>, vector<16x32xf32>
    %c0_3 = arith.constant 0 : index
    %c0_4 = arith.constant 0 : index
    %2 = vector.load %arg3[%c0_3, %c0_4] : memref<1x32xf32, #tpu.memory_space<vmem>>, vector<1x32xf32>
    %cst = arith.constant dense<0.000000e+00> : vector<8x32xf32>
    %3 = tpu.matmul %0, %1, %cst {dimension_numbers = #tpu.dot_dimension_numbers<[1], [0], [0], [1], [0, 0, 1, 1], [], []>} : vector<8x16xf32>, vector<16x32xf32>, vector<8x32xf32> -> vector<8x32xf32>
    %4 = vector.broadcast %2 : vector<1x32xf32> to vector<8x32xf32>
    %5 = arith.addf %3, %4 : vector<8x32xf32>
    %6 = arith.negf %5 : vector<8x32xf32>
    %7 = math.exp %6 : vector<8x32xf32>
    %cst_5 = arith.constant 1.000000e+00 : f32
    %8 = vector.broadcast %cst_5 : f32 to vector<8x32xf32>
    %9 = arith.addf %8, %7 : vector<8x32xf32>
    %10 = arith.divf %8, %9 : vector<8x32xf32>
    %c0_6 = arith.constant 0 : index
    %c0_7 = arith.constant 0 : index
    %11 = vector.load %arg4[%c0_6, %c0_7] : memref<32x32xf32, #tpu.memory_space<vmem>>, vector<32x32xf32>
    %c0_8 = arith.constant 0 : index
    %c0_9 = arith.constant 0 : index
    %12 = vector.load %arg5[%c0_8, %c0_9] : memref<1x32xf32, #tpu.memory_space<vmem>>, vector<1x32xf32>
    %cst_10 = arith.constant dense<0.000000e+00> : vector<8x32xf32>
    %13 = tpu.matmul %10, %11, %cst_10 {dimension_numbers = #tpu.dot_dimension_numbers<[1], [0], [0], [1], [0, 0, 1, 1], [], []>} : vector<8x32xf32>, vector<32x32xf32>, vector<8x32xf32> -> vector<8x32xf32>
    %14 = vector.broadcast %12 : vector<1x32xf32> to vector<8x32xf32>
    %15 = arith.addf %13, %14 : vector<8x32xf32>
    %16 = arith.negf %15 : vector<8x32xf32>
    %17 = math.exp %16 : vector<8x32xf32>
    %cst_11 = arith.constant 1.000000e+00 : f32
    %18 = vector.broadcast %cst_11 : f32 to vector<8x32xf32>
    %19 = arith.addf %18, %17 : vector<8x32xf32>
    %20 = arith.divf %18, %19 : vector<8x32xf32>
    %c0_12 = arith.constant 0 : index
    %c0_13 = arith.constant 0 : index
    %21 = vector.load %arg6[%c0_12, %c0_13] : memref<32x128xf32, #tpu.memory_space<vmem>>, vector<32x128xf32>
    %c0_14 = arith.constant 0 : index
    %c0_15 = arith.constant 0 : index
    %22 = vector.load %arg7[%c0_14, %c0_15] : memref<1x128xf32, #tpu.memory_space<vmem>>, vector<1x128xf32>
    %cst_16 = arith.constant dense<0.000000e+00> : vector<8x128xf32>
    %23 = tpu.matmul %20, %21, %cst_16 {dimension_numbers = #tpu.dot_dimension_numbers<[1], [0], [0], [1], [0, 0, 1, 1], [], []>} : vector<8x32xf32>, vector<32x128xf32>, vector<8x128xf32> -> vector<8x128xf32>
    %24 = vector.broadcast %22 : vector<1x128xf32> to vector<8x128xf32>
    %25 = arith.addf %23, %24 : vector<8x128xf32>
    %c0_17 = arith.constant 0 : index
    %c0_18 = arith.constant 0 : index
    %26 = vector.load %arg8[%c0_17, %c0_18] : memref<8x128xf32, #tpu.memory_space<vmem>>, vector<8x128xf32>
    tpu.vector_store %arg8[%c0_17, %c0_18], %25 {strides = array<i32>} : memref<8x128xf32, #tpu.memory_space<vmem>>, vector<8x128xf32>,
    return
  }
  func.func @transform_0(%arg0: i32) -> (i32, i32) {
    %c0_i32 = arith.constant 0 : i32
    %c0_i32_0 = arith.constant 0 : i32
    return %arg0, %c0_i32 : i32, i32
  }
  func.func @transform_1(%arg0: i32) -> (i32, i32) {
    %c0_i32 = arith.constant 0 : i32
    %c0_i32_0 = arith.constant 0 : i32
    %c0_i32_1 = arith.constant 0 : i32
    return %c0_i32, %c0_i32_0 : i32, i32
  }
  func.func @transform_2(%arg0: i32) -> (i32, i32) {
    %c0_i32 = arith.constant 0 : i32
    %c0_i32_0 = arith.constant 0 : i32
    %c0_i32_1 = arith.constant 0 : i32
    return %c0_i32, %c0_i32_0 : i32, i32
  }
  func.func @transform_3(%arg0: i32) -> (i32, i32) {
    %c0_i32 = arith.constant 0 : i32
    %c0_i32_0 = arith.constant 0 : i32
    %c0_i32_1 = arith.constant 0 : i32
    return %c0_i32, %c0_i32_0 : i32, i32
  }
  func.func @transform_4(%arg0: i32) -> (i32, i32) {
    %c0_i32 = arith.constant 0 : i32
    %c0_i32_0 = arith.constant 0 : i32
    %c0_i32_1 = arith.constant 0 : i32
    return %c0_i32, %c0_i32_0 : i32, i32
  }
  func.func @transform_5(%arg0: i32) -> (i32, i32) {
    %c0_i32 = arith.constant 0 : i32
    %c0_i32_0 = arith.constant 0 : i32
    %c0_i32_1 = arith.constant 0 : i32
    return %c0_i32, %c0_i32_0 : i32, i32
  }
  func.func @transform_6(%arg0: i32) -> (i32, i32) {
    %c0_i32 = arith.constant 0 : i32
    %c0_i32_0 = arith.constant 0 : i32
    %c0_i32_1 = arith.constant 0 : i32
    return %c0_i32, %c0_i32_0 : i32, i32
  }
  func.func @transform_7(%arg0: i32) -> (i32, i32) {
    %c0_i32 = arith.constant 0 : i32
    %c0_i32_0 = arith.constant 0 : i32
    return %arg0, %c0_i32 : i32, i32
  }
}

</mosaic_0001>

<llo_original>
// kernel: _run.1
$region0: #{_run.1}
  #allocation0 [shape = 'u32[]', space=smem, size = 0x4, offset = 0x4, fixed_abs, tag = 'smem constant byte address 0x4 - core index']
  #allocation1 [shape = 'u32[144,128]{1,0:T(1,128)}', space=vmem, size = 0x12000, scoped, tag = 'internal scratch']
  %s0 = inlined_call_operand.hbm [shape: f32[8,16], index: 0, kind: input, shape index: {}]
  %s1 = inlined_call_operand.hbm [shape: f32[16,32], index: 1, kind: input, shape index: {}]
  %s2 = inlined_call_operand.vmem [shape: f32[1,32], index: 2, kind: input, shape index: {}]
  %s3 = inlined_call_operand.hbm [shape: f32[32,32], index: 3, kind: input, shape index: {}]
  %s4 = inlined_call_operand.vmem [shape: f32[1,32], index: 4, kind: input, shape index: {}]
  %s5 = inlined_call_operand.hbm [shape: f32[32,128], index: 5, kind: input, shape index: {}]
  %s6 = inlined_call_operand.vmem [shape: f32[1,128], index: 6, kind: input, shape index: {}]
  %s7 = inlined_call_operand.hbm [shape: f32[8,128], index: 7, kind: output, shape index: {}]
  %s8 = sld [smem:[#allocation0]]
  $region54: #{_run.1} parent=0
    _
  %s10 = ssub.s32 1, %s8
  %s11 = scalar_select 0, %s10, %s8
  $region1: #{_run.1} parent=0
    #allocation2 [shape = 'u8[4096]{0}', space=vmem, size = 0x1000, scoped, tag = 'input window, operand 0, single buffered']
    #allocation3 [shape = 's32[1]{0}', space=sflag, size = 0x4, scoped, tag = 'scoped memory for _run.1']
    #allocation4 [shape = 's32[1]{0}', space=sflag, size = 0x4, scoped, tag = 'scoped memory for _run.1']
    #allocation5 [shape = 'u8[8192]{0}', space=vmem, size = 0x2000, scoped, tag = 'input window, operand 1, single buffered']
    #allocation6 [shape = 's32[1]{0}', space=sflag, size = 0x4, scoped, tag = 'scoped memory for _run.1']
    #allocation7 [shape = 'u8[16384]{0}', space=vmem, size = 0x4000, scoped, tag = 'input window, operand 3, single buffered']
    #allocation8 [shape = 'u8[16384]{0}', space=vmem, size = 0x4000, scoped, tag = 'input window, operand 5, single buffered']
    #allocation9 [shape = 's32[1]{0}', space=sflag, size = 0x4, scoped, tag = 'scoped memory for _run.1']
    #allocation10 [shape = 'u8[4096]{0}', space=vmem, size = 0x1000, scoped, tag = 'output window, operand 0, single buffered']
    %12 = vsyncpa [#allocation3], 0
    %13 = vsyncpa [#allocation6], 0
    %14 = vsyncpa [#allocation9], 0
    %15 = vsyncpa [#allocation4], 0
    // Predicated region
    $region2: #{_run.1} parent=1 // pred_check
      _
    $region3: #{_run.1} parent=1 // pred_check_branch
      %17 = sbr.rel (0) target = $region5
    $region4: #{_run.1} parent=1 // pred_region
      %s19 = ssub.s32 128, 128
      %20 = vsyncadd [#allocation3], %s19
      %s22 = sshll.u32 [#allocation2], 4
      %s23 = int_to_ptr.vmem [resolvable:$true] %s22
      %25 = dma.hbm_to_vmem [thread:$0]  %s0, 128, %s23, [#allocation3]
    $region5: #{_run.1} parent=1 // pred_fallthru
      _
    // Predicated region
    $region6: #{_run.1} parent=1 // pred_check
      _
    $region7: #{_run.1} parent=1 // pred_check_branch
      %27 = sbr.rel (0) target = $region9
    $region8: #{_run.1} parent=1 // pred_region
      %s29 = ssub.s32 256, 256
      %30 = vsyncadd [#allocation6], %s29
      %s31 = sshll.u32 [#allocation5], 4
      %s32 = int_to_ptr.vmem [resolvable:$true] %s31
      %37 = dma.hbm_to_vmem [thread:$0]  %s1, 256, %s32, [#allocation6], 128, 128, 8
    $region9: #{_run.1} parent=1 // pred_fallthru
      _
    // Predicated region
    $region10: #{_run.1} parent=1 // pred_check
      _
    $region11: #{_run.1} parent=1 // pred_check_branch
      %39 = sbr.rel (0) target = $region13
    $region12: #{_run.1} parent=1 // pred_region
      _
    $region13: #{_run.1} parent=1 // pred_fallthru
      _
    // Predicated region
    $region14: #{_run.1} parent=1 // pred_check
      _
    $region15: #{_run.1} parent=1 // pred_check_branch
      %41 = sbr.rel (0) target = $region17
    $region16: #{_run.1} parent=1 // pred_region
      %s43 = ssub.s32 512, 512
      %44 = vsyncadd [#allocation6], %s43
      %s45 = sshll.u32 [#allocation7], 4
      %s46 = int_to_ptr.vmem [resolvable:$true] %s45
      %51 = dma.hbm_to_vmem [thread:$0]  %s3, 512, %s46, [#allocation6], 128, 128, 8
    $region17: #{_run.1} parent=1 // pred_fallthru
      _
    // Predicated region
    $region18: #{_run.1} parent=1 // pred_check
      _
    $region19: #{_run.1} parent=1 // pred_check_branch
      %53 = sbr.rel (0) target = $region21
    $region20: #{_run.1} parent=1 // pred_region
      _
    $region21: #{_run.1} parent=1 // pred_fallthru
      _
    // Predicated region
    $region22: #{_run.1} parent=1 // pred_check
      _
    $region23: #{_run.1} parent=1 // pred_check_branch
      %55 = sbr.rel (0) target = $region25
    $region24: #{_run.1} parent=1 // pred_region
      %s57 = ssub.s32 512, 512
      %58 = vsyncadd [#allocation9], %s57
      %s59 = sshll.u32 [#allocation8], 4
      %s60 = int_to_ptr.vmem [resolvable:$true] %s59
      %65 = dma.hbm_to_vmem [thread:$0]  %s5, 512, %s60, [#allocation9], 128, 128, 8
    $region25: #{_run.1} parent=1 // pred_fallthru
      _
    // Predicated region
    $region26: #{_run.1} parent=1 // pred_check
      _
    $region27: #{_run.1} parent=1 // pred_check_branch
      %67 = sbr.rel (0) target = $region29
    $region28: #{_run.1} parent=1 // pred_region
      _
    $region29: #{_run.1} parent=1 // pred_fallthru
      _
    // Predicated region
    $region30: #{_run.1} parent=1 // pred_check
      _
    $region31: #{_run.1} parent=1 // pred_check_branch
      %69 = sbr.rel (0) target = $region33
    $region32: #{_run.1} parent=1 // pred_region
      %70 = dma.done [#allocation3], 128
    $region33: #{_run.1} parent=1 // pred_fallthru
      _
    // Predicated region
    $region34: #{_run.1} parent=1 // pred_check
      _
    $region35: #{_run.1} parent=1 // pred_check_branch
      %72 = sbr.rel (0) target = $region37
    $region36: #{_run.1} parent=1 // pred_region
      %73 = dma.done [#allocation6], 256
    $region37: #{_run.1} parent=1 // pred_fallthru
      _
    // Predicated region
    $region38: #{_run.1} parent=1 // pred_check
      _
    $region39: #{_run.1} parent=1 // pred_check_branch
      %75 = sbr.rel (0) target = $region41
    $region40: #{_run.1} parent=1 // pred_region
      %76 = dma.done [#allocation6], 512
    $region41: #{_run.1} parent=1 // pred_fallthru
      _
    // Predicated region
    $region42: #{_run.1} parent=1 // pred_check
      _
    $region43: #{_run.1} parent=1 // pred_check_branch
      %78 = sbr.rel (0) target = $region45
    $region44: #{_run.1} parent=1 // pred_region
      %79 = dma.done [#allocation9], 512
    $region45: #{_run.1} parent=1 // pred_fallthru
      _
    %v80 = vld [vmem:[#allocation2] sm:$0xff]
    %v81 = vld [vmem:[#allocation5] sm:$0xff]
    %v82 = vld [vmem:[#allocation5 + $0x8] sm:$0xff]
    %v83 = vld [vmem:[%s2] sm:$0x1]
    %v85 = vlaneseq
    %v86 = vshrl.u32 %v85, 7
    %v87 = vsub.s32 0, %v86
    %v88 = vrot.slane %v83, %v87
    %vm90 = vcmask 130048
    %v92 = vsel %vm90, %v80, 0
    %94 = vmatprep.subr.mxu0 0.0
    %95 = vmatpush1.msra.mxu0 %v81
    %96 = vmatprep.subr.mxu0 0.0
    %97 = vmatpush1.msra.mxu0 %v82
    %98 = vmatprep.subr.mxu0 0.0
    %99 = vmatpush1.msra.mxu0 0.0
    %100 = vmatprep.subr.mxu0 0.0
    %101 = vmatpush1.msra.mxu0 0.0
    %102 = vmatprep.subr.mxu0 0.0
    %103 = vmatpush1.msra.mxu0 0.0
    %104 = vmatprep.subr.mxu0 0.0
    %105 = vmatpush1.msra.mxu0 0.0
    %106 = vmatprep.subr.mxu0 0.0
    %107 = vmatpush1.msra.mxu0 0.0
    %108 = vmatprep.subr.mxu0 0.0
    %109 = vmatpush1.msra.mxu0 0.0
    %110 = vmatprep.subr.mxu0 0.0
    %111 = vmatpush1.msra.mxu0 0.0
    %112 = vmatprep.subr.mxu0 0.0
    %113 = vmatpush1.msra.mxu0 0.0
    %114 = vmatprep.subr.mxu0 0.0
    %115 = vmatpush1.msra.mxu0 0.0
    %116 = vmatprep.subr.mxu0 0.0
    %117 = vmatpush1.msra.mxu0 0.0
    %118 = vmatprep.subr.mxu0 0.0
    %119 = vmatpush1.msra.mxu0 0.0
    %120 = vmatprep.subr.mxu0 0.0
    %121 = vmatpush1.msra.mxu0 0.0
    %122 = vmatprep.subr.mxu0 0.0
    %123 = vmatpush1.msra.mxu0 0.0
    %124 = vmatprep.subr.mxu0 0.0
    %125 = vmatpush1.msra.mxu0 0.0
    %126 = vmatprep.subr.mxu0 0.0
    %127 = vmatpush1.msra.mxu0 0.0
    %128 = vmatprep.subr.mxu0 0.0
    %129 = vmatpush1.msra.mxu0 0.0
    %130 = vmatprep.subr.mxu0 0.0
    %131 = vmatpush1.msra.mxu0 0.0
    %132 = vmatprep.subr.mxu0 0.0
    %133 = vmatpush1.msra.mxu0 0.0
    %134 = vmatprep.subr.mxu0 0.0
    %135 = vmatpush1.msra.mxu0 0.0
    %136 = vmatprep.subr.mxu0 0.0
    %137 = vmatpush1.msra.mxu0 0.0
    %138 = vmatprep.subr.mxu0 0.0
    %139 = vmatpush1.msra.mxu0 0.0
    %140 = vmatprep.subr.mxu0 0.0
    %141 = vmatpush1.msra.mxu0 0.0
    %142 = vmatprep.subr.mxu0 0.0
    %143 = vmatpush1.msra.mxu0 0.0
    %144 = vmatprep.subr.mxu0 0.0
    %145 = vmatpush1.msra.mxu0 0.0
    %146 = vmatprep.subr.mxu0 0.0
    %147 = vmatpush1.msra.mxu0 0.0
    %148 = vmatprep.subr.mxu0 0.0
    %149 = vmatpush1.msra.mxu0 0.0
    %150 = vmatprep.subr.mxu0 0.0
    %151 = vmatpush1.msra.mxu0 0.0
    %152 = vmatprep.subr.mxu0 0.0
    %153 = vmatpush1.msra.mxu0 0.0
    %154 = vmatprep.subr.mxu0 0.0
    %155 = vmatpush1.msra.mxu0 0.0
    %156 = vmatprep.subr.mxu0 0.0
    %157 = vmatpush1.msra.mxu0 0.0
    %158 = vmatprep.mubr.f32.mxu0 0.0
    %159 = vmatmul.mubr.f32.gmra.mrb[0].mxu0 %v92
    %v160 = vpop.f32.mrb[0].mxu0
    %v161 = vadd.f32 %v88, %v160
    %v162 = vpop.f32.mrb[0].mxu0
    %163 = vdwg.mxu0
    %v164 = vxor.u32 %v161, 2147483648
    %v165 = vmul.f32 %v164, 1.442695
    %v166 = vpow.pop %v165
    %v167 = vadd.f32 %v166, 1.0
    %v168 = vrcp.pop %v167
    %v169 = vmul.f32 1.0, %v168
    %v170 = vld [vmem:[#allocation7] sm:$0xff]
    %v171 = vld [vmem:[#allocation7 + $0x8] sm:$0xff]
    %v172 = vld [vmem:[#allocation7 + $0x10] sm:$0xff]
    %v173 = vld [vmem:[#allocation7 + $0x18] sm:$0xff]
    %v174 = vld [vmem:[%s4] sm:$0x1]
    %v176 = vlaneseq
    %v177 = vshrl.u32 %v176, 7
    %v178 = vsub.s32 0, %v177
    %v179 = vrot.slane %v174, %v178
    %vm181 = vcmask 261120
    %v183 = vsel %vm181, %v169, 0
    %185 = vmatprep.subr.mxu0 0.0
    %186 = vmatpush1.msra.mxu0 %v170
    %187 = vmatprep.subr.mxu0 0.0
    %188 = vmatpush1.msra.mxu0 %v171
    %189 = vmatprep.subr.mxu0 0.0
    %190 = vmatpush1.msra.mxu0 %v172
    %191 = vmatprep.subr.mxu0 0.0
    %192 = vmatpush1.msra.mxu0 %v173
    %193 = vmatprep.subr.mxu0 0.0
    %194 = vmatpush1.msra.mxu0 0.0
    %195 = vmatprep.subr.mxu0 0.0
    %196 = vmatpush1.msra.mxu0 0.0
    %197 = vmatprep.subr.mxu0 0.0
    %198 = vmatpush1.msra.mxu0 0.0
    %199 = vmatprep.subr.mxu0 0.0
    %200 = vmatpush1.msra.mxu0 0.0
    %201 = vmatprep.subr.mxu0 0.0
    %202 = vmatpush1.msra.mxu0 0.0
    %203 = vmatprep.subr.mxu0 0.0
    %204 = vmatpush1.msra.mxu0 0.0
    %205 = vmatprep.subr.mxu0 0.0
    %206 = vmatpush1.msra.mxu0 0.0
    %207 = vmatprep.subr.mxu0 0.0
    %208 = vmatpush1.msra.mxu0 0.0
    %209 = vmatprep.subr.mxu0 0.0
    %210 = vmatpush1.msra.mxu0 0.0
    %211 = vmatprep.subr.mxu0 0.0
    %212 = vmatpush1.msra.mxu0 0.0
    %213 = vmatprep.subr.mxu0 0.0
    %214 = vmatpush1.msra.mxu0 0.0
    %215 = vmatprep.subr.mxu0 0.0
    %216 = vmatpush1.msra.mxu0 0.0
    %217 = vmatprep.subr.mxu0 0.0
    %218 = vmatpush1.msra.mxu0 0.0
    %219 = vmatprep.subr.mxu0 0.0
    %220 = vmatpush1.msra.mxu0 0.0
    %221 = vmatprep.subr.mxu0 0.0
    %222 = vmatpush1.msra.mxu0 0.0
    %223 = vmatprep.subr.mxu0 0.0
    %224 = vmatpush1.msra.mxu0 0.0
    %225 = vmatprep.subr.mxu0 0.0
    %226 = vmatpush1.msra.mxu0 0.0
    %227 = vmatprep.subr.mxu0 0.0
    %228 = vmatpush1.msra.mxu0 0.0
    %229 = vmatprep.subr.mxu0 0.0
    %230 = vmatpush1.msra.mxu0 0.0
    %231 = vmatprep.subr.mxu0 0.0
    %232 = vmatpush1.msra.mxu0 0.0
    %233 = vmatprep.subr.mxu0 0.0
    %234 = vmatpush1.msra.mxu0 0.0
    %235 = vmatprep.subr.mxu0 0.0
    %236 = vmatpush1.msra.mxu0 0.0
    %237 = vmatprep.subr.mxu0 0.0
    %238 = vmatpush1.msra.mxu0 0.0
    %239 = vmatprep.subr.mxu0 0.0
    %240 = vmatpush1.msra.mxu0 0.0
    %241 = vmatprep.subr.mxu0 0.0
    %242 = vmatpush1.msra.mxu0 0.0
    %243 = vmatprep.subr.mxu0 0.0
    %244 = vmatpush1.msra.mxu0 0.0
    %245 = vmatprep.subr.mxu0 0.0
    %246 = vmatpush1.msra.mxu0 0.0
    %247 = vmatprep.subr.mxu0 0.0
    %248 = vmatpush1.msra.mxu0 0.0
    %249 = vmatprep.mubr.f32.mxu0 0.0
    %250 = vmatmul.mubr.f32.gmra.mrb[0].mxu0 %v183
    %v251 = vpop.f32.mrb[0].mxu0
    %v252 = vadd.f32 %v179, %v251
    %v253 = vpop.f32.mrb[0].mxu0
    %254 = vdwg.mxu0
    %v255 = vxor.u32 %v252, 2147483648
    %v256 = vmul.f32 %v255, 1.442695
    %v257 = vpow.pop %v256
    %v258 = vadd.f32 %v257, 1.0
    %v259 = vrcp.pop %v258
    %v260 = vmul.f32 1.0, %v259
    %v261 = vld [vmem:[#allocation8] sm:$0xff]
    %v262 = vld [vmem:[#allocation8 + $0x8] sm:$0xff]
    %v263 = vld [vmem:[#allocation8 + $0x10] sm:$0xff]
    %v264 = vld [vmem:[#allocation8 + $0x18] sm:$0xff]
    %v265 = vld [vmem:[%s6] sm:$0x1]
    %v267 = vlaneseq
    %v268 = vshrl.u32 %v267, 7
    %v269 = vsub.s32 0, %v268
    %v270 = vrot.slane %v265, %v269
    %v273 = vsel %vm181, %v260, 0
    %275 = vmatprep.subr.mxu0 0.0
    %276 = vmatpush1.msra.mxu0 %v261
    %277 = vmatprep.subr.mxu0 0.0
    %278 = vmatpush1.msra.mxu0 %v262
    %279 = vmatprep.subr.mxu0 0.0
    %280 = vmatpush1.msra.mxu0 %v263
    %281 = vmatprep.subr.mxu0 0.0
    %282 = vmatpush1.msra.mxu0 %v264
    %283 = vmatprep.subr.mxu0 0.0
    %284 = vmatpush1.msra.mxu0 0.0
    %285 = vmatprep.subr.mxu0 0.0
    %286 = vmatpush1.msra.mxu0 0.0
    %287 = vmatprep.subr.mxu0 0.0
    %288 = vmatpush1.msra.mxu0 0.0
    %289 = vmatprep.subr.mxu0 0.0
    %290 = vmatpush1.msra.mxu0 0.0
    %291 = vmatprep.subr.mxu0 0.0
    %292 = vmatpush1.msra.mxu0 0.0
    %293 = vmatprep.subr.mxu0 0.0
    %294 = vmatpush1.msra.mxu0 0.0
    %295 = vmatprep.subr.mxu0 0.0
    %296 = vmatpush1.msra.mxu0 0.0
    %297 = vmatprep.subr.mxu0 0.0
    %298 = vmatpush1.msra.mxu0 0.0
    %299 = vmatprep.subr.mxu0 0.0
    %300 = vmatpush1.msra.mxu0 0.0
    %301 = vmatprep.subr.mxu0 0.0
    %302 = vmatpush1.msra.mxu0 0.0
    %303 = vmatprep.subr.mxu0 0.0
    %304 = vmatpush1.msra.mxu0 0.0
    %305 = vmatprep.subr.mxu0 0.0
    %306 = vmatpush1.msra.mxu0 0.0
    %307 = vmatprep.subr.mxu0 0.0
    %308 = vmatpush1.msra.mxu0 0.0
    %309 = vmatprep.subr.mxu0 0.0
    %310 = vmatpush1.msra.mxu0 0.0
    %311 = vmatprep.subr.mxu0 0.0
    %312 = vmatpush1.msra.mxu0 0.0
    %313 = vmatprep.subr.mxu0 0.0
    %314 = vmatpush1.msra.mxu0 0.0
    %315 = vmatprep.subr.mxu0 0.0
    %316 = vmatpush1.msra.mxu0 0.0
    %317 = vmatprep.subr.mxu0 0.0
    %318 = vmatpush1.msra.mxu0 0.0
    %319 = vmatprep.subr.mxu0 0.0
    %320 = vmatpush1.msra.mxu0 0.0
    %321 = vmatprep.subr.mxu0 0.0
    %322 = vmatpush1.msra.mxu0 0.0
    %323 = vmatprep.subr.mxu0 0.0
    %324 = vmatpush1.msra.mxu0 0.0
    %325 = vmatprep.subr.mxu0 0.0
    %326 = vmatpush1.msra.mxu0 0.0
    %327 = vmatprep.subr.mxu0 0.0
    %328 = vmatpush1.msra.mxu0 0.0
    %329 = vmatprep.subr.mxu0 0.0
    %330 = vmatpush1.msra.mxu0 0.0
    %331 = vmatprep.subr.mxu0 0.0
    %332 = vmatpush1.msra.mxu0 0.0
    %333 = vmatprep.subr.mxu0 0.0
    %334 = vmatpush1.msra.mxu0 0.0
    %335 = vmatprep.subr.mxu0 0.0
    %336 = vmatpush1.msra.mxu0 0.0
    %337 = vmatprep.subr.mxu0 0.0
    %338 = vmatpush1.msra.mxu0 0.0
    %339 = vmatprep.mubr.f32.mxu0 0.0
    %340 = vmatmul.mubr.f32.gmra.mrb[0].mxu0 %v273
    %v341 = vpop.f32.mrb[0].mxu0
    %v342 = vadd.f32 %v270, %v341
    %v343 = vpop.f32.mrb[0].mxu0
    %344 = vdwg.mxu0
    %345 = vst [vmem:[#allocation10] sm:$0xff] %v342
    // Predicated region
    $region46: #{_run.1} parent=1 // pred_check
      _
    $region47: #{_run.1} parent=1 // pred_check_branch
      %347 = sbr.rel (0) target = $region49
    $region48: #{_run.1} parent=1 // pred_region
      %s349 = ssub.s32 128, 128
      %350 = vsyncadd [#allocation4], %s349
      %s352 = sshll.u32 [#allocation10], 4
      %s353 = int_to_ptr.vmem [resolvable:$true] %s352
      %355 = dma.vmem_to_hbm [thread:$0]  %s353, 128, %s7, [#allocation4]
    $region49: #{_run.1} parent=1 // pred_fallthru
      _
    // Predicated region
    $region50: #{_run.1} parent=1 // pred_check
      _
    $region51: #{_run.1} parent=1 // pred_check_branch
      %357 = sbr.rel (0) target = $region53
    $region52: #{_run.1} parent=1 // pred_region
      %358 = dma.done [#allocation4], 128
    $region53: #{_run.1} parent=1 // pred_fallthru
      _
    %359 = vsyncpa [#allocation3], 1
    %360 = vsyncpa [#allocation6], 1
    %361 = vsyncpa [#allocation9], 1
    %362 = vsyncpa [#allocation4], 1

</llo_original>
